<compile_context>
chip_gen: v6e
topology: v6e:2x2x1
jax: 0.10.0
libtpu: 0.0.40
codegen_flags: <defaults>
</compile_context>

<pallas_src>
import functools

import jax
import jax.numpy as jnp
import numpy as np
from jax import lax
from jax.experimental import pallas as pl
from jax.experimental.pallas import tpu as pltpu


def _round_up(v, m):
    return -(-v // m) * m


def _padded_bytes_2d(rows, cols, itemsize):
    """Bytes of a (rows, cols) VMEM tile after (sublane, 128-lane) padding."""
    sublane = max(8, 32 // max(int(itemsize), 1))
    return _round_up(rows, sublane) * _round_up(cols, 128) * int(itemsize)


# ----------------------------------------------------------------------------
# Precomputed interpolation tables (pure numpy, trace-time constants)
# ----------------------------------------------------------------------------
def _interp_tables(H, W, C, pad):
    """Per-shift interpolation matrices.

    For integer shift s the padded-image sampling offset is
        dx = s * (1/Hp + 1/Wp) * Wp/2,   dy = s * (1/Hp + 1/Wp) * Hp/2,
    exactly the collapsed form of the module's base_grid + shift fed into
    grid_sample(align_corners=False).  Each matrix folds the constant shift,
    replicate padding (clamp) and grid_sample 'zeros' padding into a dense
    (out_pixel, src_pixel) weight matrix with at most two nonzeros per row.

    Returns:
      sy_tab : (2p+1, H, H)      height matrices (out, src)
      sxbd   : (2p+1, C*W, C*W)  block-diagonal width matrices (src, out),
               ready for a lane-dense (H, C*W) @ (C*W, C*W) matmul.
    """
    Hp, Wp = H + 2 * pad, W + 2 * pad
    scale = 1.0 / Hp + 1.0 / Wp
    n_shift = 2 * pad + 1

    def axis_table(n_pix, n_padded):
        o = np.arange(n_pix)[:, None]
        src = np.arange(n_pix)[None, :]
        mats = []
        for s in range(n_shift):
            delta = s * scale * (n_padded * 0.5)
            d0 = int(np.floor(delta))
            w1 = float(delta - d0)
            w0 = 1.0 - w1

            def sel(off):
                r = o + off                               # padded-image coord
                valid = (r >= 0) & (r < n_padded)         # 'zeros' padding
                sidx = np.clip(r - pad, 0, n_pix - 1)     # replicate padding
                return np.where(valid & (sidx == src), 1.0, 0.0)

            mats.append(w0 * sel(d0) + w1 * sel(d0 + 1))
        return np.stack(mats).astype(np.float32)          # (2p+1, out, src)

    sy_tab = axis_table(H, Hp)                            # (2p+1, H, H)
    sx_tab = axis_table(W, Wp)                            # (2p+1, W, W) (out, src)
    sxt = np.transpose(sx_tab, (0, 2, 1))                 # (2p+1, src, out)

    CW = C * W
    sxbd = np.zeros((n_shift, CW, CW), np.float32)
    for c in range(C):
        sxbd[:, c * W:(c + 1) * W, c * W:(c + 1) * W] = sxt
    return jnp.asarray(sy_tab), jnp.asarray(sxbd)


# ----------------------------------------------------------------------------
# Kernel: one grid step = B images in lane-dense (H, C*W) layout
# ----------------------------------------------------------------------------
def _shift_kernel(shift_ref, sy_ref, sxbd_ref, x_ref, o_ref, *, B):
    """shift_ref: (2*N_pad,) int32 in SMEM (scalar prefetch).
    sy_ref: (2p+1, H, H), sxbd_ref: (2p+1, CW, CW) resident VMEM tables.
    x_ref/o_ref: (B, H, CW) image blocks."""
    n = pl.program_id(0)

    def body(b, carry):
        gi = n * B + b
        isx = shift_ref[2 * gi]                  # width-shift index  (0..2p)
        isy = shift_ref[2 * gi + 1]              # height-shift index (0..2p)
        Sy = sy_ref[isy]                         # (H, H)
        SxBD = sxbd_ref[isx]                     # (CW, CW) block-diagonal

        # Height resample, then width resample — both lane-dense MXU matmuls,
        # intermediate stays an SSA value (no shared scratch serialization).
        y = jnp.dot(Sy, x_ref[b], preferred_element_type=jnp.float32)
        o_ref[b] = jnp.dot(y, SxBD,
                           preferred_element_type=jnp.float32).astype(o_ref.dtype)
        return carry

    lax.fori_loop(0, B, body, 0)


# ----------------------------------------------------------------------------
# Wrapper
# ----------------------------------------------------------------------------
def _choose_block(N, H, CW, in_itemsize, out_itemsize, table_bytes_2buf):
    """Images-per-block B and VMEM limit, sized against padded layouts."""
    try:
        vmem_cap = int(pltpu.get_tpu_info().vmem_capacity_bytes)
    except Exception:  # pragma: no cover - conservative fallback (v7x per-TC)
        vmem_cap = 64 * 1024 * 1024
    vmem_limit = int(min(max(32 << 20, (vmem_cap * 3) // 4), 96 << 20))

    per_image = 2 * (_padded_bytes_2d(H, CW, in_itemsize)
                     + _padded_bytes_2d(H, CW, out_itemsize))  # double-buffered
    budget = int(vmem_limit * 0.65) - int(table_bytes_2buf)
    B = max(1, budget // max(per_image, 1))
    if N >= 2:
        B = min(B, (N + 1) // 2)   # keep >= 2 grid steps (megacore / 2-TC balance)
    return int(max(1, min(B, N))), vmem_limit


def _random_shift_images(x, shift_ints, pad, block_images=None):
    """x: (N, C, H, W); shift_ints: (N, 2) int32 in [0, 2*pad] ([:,0]=x, [:,1]=y)."""
    N, C, H, W = x.shape
    CW = C * W
    n_shift = 2 * pad + 1
    sy_tab, sxbd_tab = _interp_tables(H, W, C, pad)

    table_bytes_2buf = 2 * n_shift * (_padded_bytes_2d(H, H, 4)
                                      + _padded_bytes_2d(CW, CW, 4))
    B_auto, vmem_limit = _choose_block(N, H, CW, x.dtype.itemsize,
                                       x.dtype.itemsize, table_bytes_2buf)
    B = B_auto if block_images is None else int(block_images)
    B = int(max(1, min(B, N)))

    n_blocks = -(-N // B)
    N_pad = n_blocks * B

    # Lane-dense layout: (N, C, H, W) -> (N, H, C*W)   (pure XLA layout plumbing)
    x3 = jnp.transpose(x, (0, 2, 1, 3)).reshape(N, H, CW)
    shift_flat = jnp.clip(shift_ints.astype(jnp.int32), 0, n_shift - 1).reshape(-1)
    if N_pad != N:  # pad batch with dummy images instead of shrinking B
        x3 = jnp.pad(x3, ((0, N_pad - N), (0, 0), (0, 0)))
        shift_flat = jnp.pad(shift_flat, (0, 2 * (N_pad - N)))

    kernel = functools.partial(_shift_kernel, B=B)
    out3 = pl.pallas_call(
        kernel,
        out_shape=jax.ShapeDtypeStruct((N_pad, H, CW), x.dtype),
        grid_spec=pltpu.PrefetchScalarGridSpec(
            num_scalar_prefetch=1,
            grid=(n_blocks,),
            in_specs=[
                pl.BlockSpec((n_shift, H, H), lambda n, s: (0, 0, 0)),    # Sy table
                pl.BlockSpec((n_shift, CW, CW), lambda n, s: (0, 0, 0)),  # SxBD table
                pl.BlockSpec((B, H, CW), lambda n, s: (n, 0, 0)),         # image block
            ],
            out_specs=pl.BlockSpec((B, H, CW), lambda n, s: (n, 0, 0)),
        ),
        compiler_params=pltpu.CompilerParams(
            dimension_semantics=("parallel",),
            vmem_limit_bytes=vmem_limit,
        ),
    )(shift_flat, sy_tab, sxbd_tab, x3)

    out3 = out3[:N]
    return jnp.transpose(out3.reshape(N, H, C, W), (0, 2, 1, 3))


def random_shifts_aug_new(x, key, pad=2, consistent=False):
    """Forward pass of RandomShiftsAugNew.  Accepts 4D (n,c,h,w) or 5D (n,t,c,h,w)."""
    if x.ndim == 4:
        n = x.shape[0]
        shift = jax.random.randint(key, (n, 2), 0, 2 * pad + 1, dtype=jnp.int32)
        return _random_shift_images(x, shift, pad)
    # 5D path: (n, t, c, h, w) -> permute to (t, n, ...), flatten, run, undo.
    n, t = x.shape[0], x.shape[1]
    xt = jnp.transpose(x, (1, 0, 2, 3, 4))          # (t, n, c, h, w)
    if consistent:
        shift = jax.random.randint(key, (n, 2), 0, 2 * pad + 1, dtype=jnp.int32)
        shift = jnp.tile(shift[None], (t, 1, 1))    # same shift for every t
    else:
        shift = jax.random.randint(key, (t, n, 2), 0, 2 * pad + 1, dtype=jnp.int32)
    flat = xt.reshape((t * n,) + x.shape[2:])
    out = _random_shift_images(flat, shift.reshape(t * n, 2), pad)
    out = out.reshape(xt.shape)
    return jnp.transpose(out, (1, 0, 2, 3, 4))


# ----------------------------------------------------------------------------
# References for testing
# ----------------------------------------------------------------------------
def _reference_integer_crop(x, shift_ints, pad):
    # Pure-JAX reference valid for square images (offsets are exact integers):
    # replicate-pad then crop at (dy, dx).
    N, C, H, W = x.shape
    xp = jnp.pad(x, ((0, 0), (0, 0), (pad, pad), (pad, pad)), mode='edge')

    def crop(img, s):
        # s[0] -> x/width shift, s[1] -> y/height shift
        return lax.dynamic_slice(img, (0, s[1], s[0]), (C, H, W))

    return jax.vmap(crop)(xp, shift_ints)


def _reference_grid_sample(x, shift_ints, pad):
    # Independent numpy reference following the PyTorch module math exactly
    # (replicate pad -> base grid -> shift -> bilinear grid_sample, zeros pad).
    N, C, H, W = x.shape
    Hp, Wp = H + 2 * pad, W + 2 * pad
    xp = np.pad(x, ((0, 0), (0, 0), (pad, pad), (pad, pad)), mode='edge')
    eps_h, eps_w = 1.0 / Hp, 1.0 / Wp
    ar_h = np.linspace(-1.0 + eps_h, 1.0 - eps_h, Hp)[:H]
    ar_w = np.linspace(-1.0 + eps_w, 1.0 - eps_w, Wp)[:W]
    scale = 1.0 / Hp + 1.0 / Wp
    out = np.zeros((N, C, H, W), np.float64)
    for n in range(N):
        gx = np.broadcast_to(ar_w[None, :] + shift_ints[n, 0] * scale, (H, W))
        gy = np.broadcast_to(ar_h[:, None] + shift_ints[n, 1] * scale, (H, W))
        ix = (gx + 1.0) * Wp / 2.0 - 0.5        # align_corners=False
        iy = (gy + 1.0) * Hp / 2.0 - 0.5
        x0 = np.floor(ix).astype(np.int64)
        y0 = np.floor(iy).astype(np.int64)
        for dy in (0, 1):
            for dx in (0, 1):
                xs, ys = x0 + dx, y0 + dy
                wgt = (1.0 - np.abs(ix - xs)) * (1.0 - np.abs(iy - ys))
                valid = (xs >= 0) & (xs < Wp) & (ys >= 0) & (ys < Hp)
                xc = np.clip(xs, 0, Wp - 1)
                yc = np.clip(ys, 0, Hp - 1)
                samp = xp[n][:, yc, xc]          # (C, H, W)
                out[n] += np.where(valid[None], wgt[None] * samp, 0.0)
    return out.astype(np.float32)


if __name__ == "__main__":
    key = jax.random.PRNGKey(0)
    k1, k2, k3, k4 = jax.random.split(key, 4)
    pad = 2

    # --- test 1a: primary small square case (integer-exact shifts) ---
    N, C, H, W = 2, 4, 16, 16
    x = jax.random.normal(k1, (N, C, H, W), dtype=jnp.float32)
    shift = jax.random.randint(k2, (N, 2), 0, 2 * pad + 1, dtype=jnp.int32)
    out = jax.block_until_ready(_random_shift_images(x, shift, pad))
    ref = _reference_integer_crop(x, shift, pad)
    np.testing.assert_allclose(np.asarray(out), np.asarray(ref), atol=1e-4, rtol=1e-4)

    # --- test 1b: multi-block grid (B=2 images per step, 4 grid steps) ---
    Nb = 8
    xb = jax.random.normal(k3, (Nb, C, H, W), dtype=jnp.float32)
    shiftb = jax.random.randint(k4, (Nb, 2), 0, 2 * pad + 1, dtype=jnp.int32)
    outb = jax.block_until_ready(_random_shift_images(xb, shiftb, pad, block_images=2))
    refb = _reference_integer_crop(xb, shiftb, pad)
    np.testing.assert_allclose(np.asarray(outb), np.asarray(refb), atol=1e-4, rtol=1e-4)

    # --- test 1c: N not a multiple of B (exercises batch padding + slice) ---
    Nc = 5
    xc = xb[:Nc]
    shiftc = shiftb[:Nc]
    outc = jax.block_until_ready(_random_shift_images(xc, shiftc, pad, block_images=2))
    refc = _reference_integer_crop(xc, shiftc, pad)
    np.testing.assert_allclose(np.asarray(outc), np.asarray(refc), atol=1e-4, rtol=1e-4)

    # --- test 2: non-square images (fractional bilinear + zeros-padding path) ---
    N2, C2, H2, W2 = 2, 3, 12, 20
    x2 = jax.random.normal(k2, (N2, C2, H2, W2), dtype=jnp.float32)
    shift2 = jax.random.randint(k1, (N2, 2), 0, 2 * pad + 1, dtype=jnp.int32)
    out2 = jax.block_until_ready(_random_shift_images(x2, shift2, pad))
    ref2 = _reference_grid_sample(np.asarray(x2), np.asarray(shift2), pad)
    np.testing.assert_allclose(np.asarray(out2), ref2, atol=1e-3, rtol=1e-3)

    # --- test 3: exercise the 5D (n, t, c, h, w) public path ---
    x5 = jax.random.normal(k3, (2, 3, 4, 16, 16), dtype=jnp.float32)
    out5 = jax.block_until_ready(random_shifts_aug_new(x5, k4, pad=pad, consistent=True))
    assert out5.shape == x5.shape

    print("KERNEL_OK")
</pallas_src>

<mosaic_0001>
module attributes {stable_mosaic.version = 11 : i64} {
  func.func @_shift_kernel(%arg0: i32, %arg1: memref<4xi32, #tpu.memory_space<smem>>, %arg2: memref<5x16x16xf32, #tpu.memory_space<vmem>>, %arg3: memref<5x64x64xf32, #tpu.memory_space<vmem>>, %arg4: memref<1x16x64xf32, #tpu.memory_space<vmem>>, %arg5: memref<1x16x64xf32, #tpu.memory_space<vmem>>) attributes {dimension_semantics = [#tpu.dimension_semantics<parallel>], iteration_bounds = array<i64: 2>, scalar_prefetch = 1 : i64, scratch_operands = 0 : i64, tpu.core_type = #tpu.core_type<tc>, window_params = [{pipeline_mode = #tpu.pipeline_mode<synchronous>, transform_indices = @transform_0, window_bounds = array<i64: 5, 16, 16>}, {pipeline_mode = #tpu.pipeline_mode<synchronous>, transform_indices = @transform_1, window_bounds = array<i64: 5, 64, 64>}, {transform_indices = @transform_2, window_bounds = array<i64: 1, 16, 64>}, {transform_indices = @transform_3, window_bounds = array<i64: 1, 16, 64>}]} {
    %c0_i32 = arith.constant 0 : i32
    %c1_i32 = arith.constant 1 : i32
    %0 = arith.muli %arg0, %c1_i32 : i32
    %1 = arith.addi %0, %c0_i32 : i32
    %c2_i32 = arith.constant 2 : i32
    %2 = arith.muli %c2_i32, %1 : i32
    %3 = arith.index_cast %2 : i32 to index
    %4 = memref.load %arg1[%3] : memref<4xi32, #tpu.memory_space<smem>>
    %c2_i32_0 = arith.constant 2 : i32
    %5 = arith.muli %c2_i32_0, %1 : i32
    %c1_i32_1 = arith.constant 1 : i32
    %6 = arith.addi %5, %c1_i32_1 : i32
    %7 = arith.index_cast %6 : i32 to index
    %8 = memref.load %arg1[%7] : memref<4xi32, #tpu.memory_space<smem>>
    %9 = arith.index_cast %8 : i32 to index
    %c0 = arith.constant 0 : index
    %c0_2 = arith.constant 0 : index
    %10 = vector.load %arg2[%9, %c0, %c0_2] : memref<5x16x16xf32, #tpu.memory_space<vmem>>, vector<1x16x16xf32>
    %11 = vector.shape_cast %10 : vector<1x16x16xf32> to vector<16x16xf32>
    %12 = arith.index_cast %4 : i32 to index
    %c0_3 = arith.constant 0 : index
    %c0_4 = arith.constant 0 : index
    %13 = vector.load %arg3[%12, %c0_3, %c0_4] : memref<5x64x64xf32, #tpu.memory_space<vmem>>, vector<1x64x64xf32>
    %14 = vector.shape_cast %13 : vector<1x64x64xf32> to vector<64x64xf32>
    %15 = arith.index_cast %c0_i32 : i32 to index
    %c0_5 = arith.constant 0 : index
    %c0_6 = arith.constant 0 : index
    %16 = vector.load %arg4[%15, %c0_5, %c0_6] : memref<1x16x64xf32, #tpu.memory_space<vmem>>, vector<1x16x64xf32>
    %17 = vector.shape_cast %16 : vector<1x16x64xf32> to vector<16x64xf32>
    %cst = arith.constant dense<0.000000e+00> : vector<16x64xf32>
    %18 = tpu.matmul %11, %17, %cst {dimension_numbers = #tpu.dot_dimension_numbers<[1], [0], [0], [1], [0, 0, 1, 1], [], []>} : vector<16x16xf32>, vector<16x64xf32>, vector<16x64xf32> -> vector<16x64xf32>
    %cst_7 = arith.constant dense<0.000000e+00> : vector<16x64xf32>
    %19 = tpu.matmul %18, %14, %cst_7 {dimension_numbers = #tpu.dot_dimension_numbers<[1], [0], [0], [1], [0, 0, 1, 1], [], []>} : vector<16x64xf32>, vector<64x64xf32>, vector<16x64xf32> -> vector<16x64xf32>
    %20 = arith.index_cast %c0_i32 : i32 to index
    %c0_8 = arith.constant 0 : index
    %c0_9 = arith.constant 0 : index
    %21 = vector.load %arg5[%20, %c0_8, %c0_9] : memref<1x16x64xf32, #tpu.memory_space<vmem>>, vector<1x16x64xf32>
    %22 = vector.shape_cast %21 : vector<1x16x64xf32> to vector<16x64xf32>
    %23 = vector.shape_cast %19 : vector<16x64xf32> to vector<1x16x64xf32>
    tpu.vector_store %arg5[%20, %c0_8, %c0_9], %23 {strides = array<i32>} : memref<1x16x64xf32, #tpu.memory_space<vmem>>, vector<1x16x64xf32>,
    %c1_i32_10 = arith.constant 1 : i32
    return
  }
  func.func @transform_0(%arg0: i32, %arg1: memref<4xi32, #tpu.memory_space<smem>>) -> (i32, i32, i32) {
    %c0_i32 = arith.constant 0 : i32
    %c0_i32_0 = arith.constant 0 : i32
    %c0_i32_1 = arith.constant 0 : i32
    %c0_i32_2 = arith.constant 0 : i32
    return %c0_i32, %c0_i32_0, %c0_i32_1 : i32, i32, i32
  }
  func.func @transform_1(%arg0: i32, %arg1: memref<4xi32, #tpu.memory_space<smem>>) -> (i32, i32, i32) {
    %c0_i32 = arith.constant 0 : i32
    %c0_i32_0 = arith.constant 0 : i32
    %c0_i32_1 = arith.constant 0 : i32
    %c0_i32_2 = arith.constant 0 : i32
    return %c0_i32, %c0_i32_0, %c0_i32_1 : i32, i32, i32
  }
  func.func @transform_2(%arg0: i32, %arg1: memref<4xi32, #tpu.memory_space<smem>>) -> (i32, i32, i32) {
    %c0_i32 = arith.constant 0 : i32
    %c0_i32_0 = arith.constant 0 : i32
    %c0_i32_1 = arith.constant 0 : i32
    return %arg0, %c0_i32, %c0_i32_0 : i32, i32, i32
  }
  func.func @transform_3(%arg0: i32, %arg1: memref<4xi32, #tpu.memory_space<smem>>) -> (i32, i32, i32) {
    %c0_i32 = arith.constant 0 : i32
    %c0_i32_0 = arith.constant 0 : i32
    %c0_i32_1 = arith.constant 0 : i32
    return %arg0, %c0_i32, %c0_i32_0 : i32, i32, i32
  }
}

</mosaic_0001>

<llo_original>
// kernel: tpu_custom_call.1
$region0: #{tpu_custom_call.1}
  #allocation0 [shape = 'u32[]', space=smem, size = 0x4, offset = 0x4, fixed_abs, tag = 'smem constant byte address 0x4 - core index']
  #allocation1 [shape = 'u32[144,128]{1,0:T(1,128)}', space=vmem, size = 0x12000, scoped, tag = 'internal scratch']
  #allocation2 [shape = 's32[1]{0}', space=sflag, size = 0x4, scoped, tag = 'scoped memory for tpu_custom_call.1']
  #allocation3 [shape = 'u8[512]{0}', space=smem, size = 0x200, scoped, tag = 'prefetched SMEM operand 0']
  %s0 = inlined_call_operand.hbm [shape: s32[4], index: 0, kind: input, shape index: {}]
  %s1 = inlined_call_operand.hbm [shape: f32[5,16,16], index: 1, kind: input, shape index: {}]
  %s2 = inlined_call_operand.hbm [shape: f32[5,64,64], index: 2, kind: input, shape index: {}]
  %s3 = inlined_call_operand.hbm [shape: f32[2,16,64], index: 3, kind: input, shape index: {}]
  %s4 = inlined_call_operand.hbm [shape: f32[2,16,64], index: 4, kind: output, shape index: {}]
  %s5 = sld [smem:[#allocation0]]
  $region57: #{tpu_custom_call.1} parent=0
    _
  %s7 = ssub.s32 1, %s5
  %s8 = scalar_select 0, %s7, %s5
  %10 = dma.hbm_to_smem %s0, 16, [#allocation3], [#allocation2]
  %11 = dma.done [#allocation2], 16
  %12 = sfence
  $region1: #{tpu_custom_call.1} parent=0
    #allocation4 [shape = 'u8[40960]{0}', space=vmem, size = 0xa000, scoped, tag = 'input window, operand 1, single buffered']
    #allocation5 [shape = 's32[2]{0}', space=sflag, size = 0x8, scoped, tag = 'scoped memory for tpu_custom_call.1']
    #allocation6 [shape = 's32[2]{0}', space=sflag, size = 0x8, scoped, tag = 'scoped memory for tpu_custom_call.1']
    #allocation7 [shape = 'u8[163840]{0}', space=vmem, size = 0x28000, scoped, tag = 'input window, operand 2, single buffered']
    #allocation8 [shape = 's32[1]{0}', space=sflag, size = 0x4, scoped, tag = 'scoped memory for tpu_custom_call.1']
    #allocation9 [shape = 'u8[16384]{0}', space=vmem, size = 0x4000, scoped, tag = 'input window, operand 3']
    #allocation10 [shape = 'u8[16384]{0}', space=vmem, size = 0x4000, scoped, tag = 'output window, operand 0']
    %13 = vsyncpa [#allocation5], 0
    %14 = vsyncpa [#allocation8], 0
    %15 = vsyncpa [#allocation6], 0
    %s16 = scalar_lea.sflag [#allocation6], 1
    %17 = vsyncpa %s16, 0
    loop: start=0, step=1, limit=4
    $region2: #{tpu_custom_call.1} parent=1 // loop_pre_header
      _
    $region3: #{tpu_custom_call.1} parent=1 // loop_header
      %s19 = sphi 0, %s23
      %p20 = scmp.ge.s32.totalorder %s19, 4
      %s27 = sphi 0, %s27
      %s29 = sphi 0, %s27
      %s30 = sphi 0, %s29
      %s44 = sphi 0, %s30
      %s48 = sphi 0, %s48
      %s50 = sphi 0, %s48
      %s51 = sphi 0, %s50
      %s65 = sphi 0, %s51
      %s71 = sphi 0, %s73
      %s74 = sphi 0, %s71
      %s75 = sphi 0, %s74
      %s91 = sphi 0, %s75
      %s97 = sphi 0, %s99
      %s100 = sphi 0, %s97
      %s101 = sphi 0, %s100
      %s117 = sphi 0, %s101
    $region4: #{tpu_custom_call.1} parent=1 // loop_header_branch
      %22 = sbr.rel (%p20) target = $region8
    $region5: #{tpu_custom_call.1} parent=1 // loop_body
      %s24 = ssub.s32 %s19, 1
      %s25 = ssub.s32 %s19, 2
      %s26 = sadd.s32 %s19, 1
      %s28 = sadd.s32 %s27, 1
      %p31 = scmp.eq.s32.totalorder %s19, 1
      %p32 = scmp.ne.s32.totalorder %s27, %s29
      %p33 = scmp.eq.s32.totalorder %s19, 0
      %p34 = por %p32, %p33
      %p35 = scmp.ne.s32.totalorder %s27, %s29
      %p36 = scmp.eq.s32.totalorder %s24, 1
      %p37 = por %p35, %p36
      %p38 = scmp.ne.s32.totalorder %s29, %s30
      %p39 = scmp.eq.s32.totalorder %s24, 0
      %p40 = por %p38, %p39
      %p41 = scmp.ne.s32.totalorder %s29, %s30
      %p42 = scmp.eq.s32.totalorder %s25, 1
      %p43 = por %p41, %p42
      %p45 = scmp.ne.s32.totalorder %s30, %s44
      %p46 = scmp.eq.s32.totalorder %s25, 0
      %p47 = por %p45, %p46
      %s49 = sadd.s32 %s48, 1
      %p52 = scmp.eq.s32.totalorder %s19, 1
      %p53 = scmp.ne.s32.totalorder %s48, %s50
      %p54 = scmp.eq.s32.totalorder %s19, 0
      %p55 = por %p53, %p54
      %p56 = scmp.ne.s32.totalorder %s48, %s50
      %p57 = scmp.eq.s32.totalorder %s24, 1
      %p58 = por %p56, %p57
      %p59 = scmp.ne.s32.totalorder %s50, %s51
      %p60 = scmp.eq.s32.totalorder %s24, 0
      %p61 = por %p59, %p60
      %p62 = scmp.ne.s32.totalorder %s50, %s51
      %p63 = scmp.eq.s32.totalorder %s25, 1
      %p64 = por %p62, %p63
      %p66 = scmp.ne.s32.totalorder %s51, %s65
      %p67 = scmp.eq.s32.totalorder %s25, 0
      %p68 = por %p66, %p67
      %s69 = ssub.s32 %s19, %s26
      %p70 = scmp.eq.s32.totalorder %s69, 0
      %s72 = sadd.s32 %s71, 1
      %s73 = scalar_select %p70, %s71, %s72
      %p76 = pneg %p70
      %p77 = scmp.eq.s32.totalorder %s19, 1
      %p78 = por %p76, %p77
      %p79 = scmp.ne.s32.totalorder %s71, %s74
      %p80 = scmp.eq.s32.totalorder %s19, 0
      %p81 = por %p79, %p80
      %p82 = scmp.ne.s32.totalorder %s71, %s74
      %p83 = scmp.eq.s32.totalorder %s24, 1
      %p84 = por %p82, %p83
      %p85 = scmp.ne.s32.totalorder %s74, %s75
      %p86 = scmp.eq.s32.totalorder %s24, 0
      %p87 = por %p85, %p86
      %p88 = scmp.ne.s32.totalorder %s74, %s75
      %p89 = scmp.eq.s32.totalorder %s25, 1
      %p90 = por %p88, %p89
      %p92 = scmp.ne.s32.totalorder %s75, %s91
      %p93 = scmp.eq.s32.totalorder %s25, 0
      %p94 = por %p92, %p93
      %s95 = ssub.s32 %s19, %s26
      %p96 = scmp.eq.s32.totalorder %s95, 0
      %s98 = sadd.s32 %s97, 1
      %s99 = scalar_select %p96, %s97, %s98
      %p102 = pneg %p96
      %p103 = scmp.eq.s32.totalorder %s19, 1
      %p104 = por %p102, %p103
      %p105 = scmp.ne.s32.totalorder %s97, %s100
      %p106 = scmp.eq.s32.totalorder %s19, 0
      %p107 = por %p105, %p106
      %p108 = scmp.ne.s32.totalorder %s97, %s100
      %p109 = scmp.eq.s32.totalorder %s24, 1
      %p110 = por %p108, %p109
      %p111 = scmp.ne.s32.totalorder %s100, %s101
      %p112 = scmp.eq.s32.totalorder %s24, 0
      %p113 = por %p111, %p112
      %p114 = scmp.ne.s32.totalorder %s100, %s101
      %p115 = scmp.eq.s32.totalorder %s25, 1
      %p116 = por %p114, %p115
      %p118 = scmp.ne.s32.totalorder %s101, %s117
      %p119 = scmp.eq.s32.totalorder %s25, 0
      %p120 = por %p118, %p119
      %p121 = scmp.le.s32.totalorder 1, %s19
      %p122 = scmp.lt.s32.totalorder %s19, 3
      %p123 = pnand %p121, %p122
      %p124 = pneg %p123
      // Predicated region
      $region9: #{tpu_custom_call.1} parent=5 // pred_check
        _
      $region10: #{tpu_custom_call.1} parent=5 // pred_check_branch
        %126 = sbr.rel (%p123) target = $region12
      $region11: #{tpu_custom_call.1} parent=5 // pred_region
        %s127 = ssub.s32 %s19, 1
        // Predicated region
        $region13: #{tpu_custom_call.1} parent=11 // pred_check
          %p128 = pneg %p40
        $region14: #{tpu_custom_call.1} parent=11 // pred_check_branch
          %130 = sbr.rel (%p128) target = $region16
        $region15: #{tpu_custom_call.1} parent=11 // pred_region
          %s132 = ssub.s32 1280, 1280
          %133 = vsyncadd [#allocation5], %s132
          %s134 = sshll.u32 [#allocation4], 4
          %s135 = int_to_ptr.vmem [resolvable:$true] %s134
          %140 = dma.hbm_to_vmem [thread:$0]  %s1, 1280, %s135, [#allocation5], 128, 128, 8
        $region16: #{tpu_custom_call.1} parent=11 // pred_fallthru
          _
        // Predicated region
        $region17: #{tpu_custom_call.1} parent=11 // pred_check
          %p141 = pneg %p61
        $region18: #{tpu_custom_call.1} parent=11 // pred_check_branch
          %143 = sbr.rel (%p141) target = $region20
        $region19: #{tpu_custom_call.1} parent=11 // pred_region
          %s145 = ssub.s32 5120, 5120
          %146 = vsyncadd [#allocation8], %s145
          %s147 = sshll.u32 [#allocation7], 4
          %s148 = int_to_ptr.vmem [resolvable:$true] %s147
          %153 = dma.hbm_to_vmem [thread:$0]  %s2, 5120, %s148, [#allocation8], 128, 128, 8
        $region20: #{tpu_custom_call.1} parent=11 // pred_fallthru
          _
      $region12: #{tpu_custom_call.1} parent=5 // pred_fallthru
        _
      %p154 = scmp.lt.s32.totalorder %s19, 2
      // Predicated region
      $region21: #{tpu_custom_call.1} parent=5 // pred_check
        %p155 = pneg %p154
      $region22: #{tpu_custom_call.1} parent=5 // pred_check_branch
        %157 = sbr.rel (%p155) target = $region24
      $region23: #{tpu_custom_call.1} parent=5 // pred_region
        // Predicated region
        $region25: #{tpu_custom_call.1} parent=23 // pred_check
          %p158 = pneg %p81
        $region26: #{tpu_custom_call.1} parent=23 // pred_check_branch
          %160 = sbr.rel (%p158) target = $region28
        $region27: #{tpu_custom_call.1} parent=23 // pred_region
          %s161 = sand.u32 %s19, 1
          %s162 = scalar_lea.sflag [#allocation5], %s161
          %s163 = sand.u32 %s71, 1
          %s164 = smul.addr %s163, 16
          %s165 = scalar_lea.vmem [#allocation9], %s164
          %s167 = ssub.s32 256, 256
          %168 = vsyncadd %s162, %s167
          %s169 = smul.addr %s19, 2
          %s170 = smul.addr %s169, 128
          %s171 = scalar_lea.hbm %s3, %s170
          %s172 = sshll.u32 %s165, 4
          %s173 = int_to_ptr.vmem [resolvable:$true] %s172
          %178 = dma.hbm_to_vmem [thread:$0]  %s171, 256, %s173, %s162, 128, 128, 8
        $region28: #{tpu_custom_call.1} parent=23 // pred_fallthru
          _
      $region24: #{tpu_custom_call.1} parent=5 // pred_fallthru
        _
      %p179 = scmp.le.s32.totalorder 1, %s19
      %p180 = scmp.lt.s32.totalorder %s19, 3
      %p181 = pnand %p179, %p180
      %p182 = pneg %p181
      // Predicated region
      $region29: #{tpu_custom_call.1} parent=5 // pred_check
        _
      $region30: #{tpu_custom_call.1} parent=5 // pred_check_branch
        %184 = sbr.rel (%p181) target = $region32
      $region31: #{tpu_custom_call.1} parent=5 // pred_region
        %s185 = ssub.s32 %s19, 1
        // Predicated region
        $region33: #{tpu_custom_call.1} parent=31 // pred_check
          %p186 = pneg %p40
        $region34: #{tpu_custom_call.1} parent=31 // pred_check_branch
          %188 = sbr.rel (%p186) target = $region36
        $region35: #{tpu_custom_call.1} parent=31 // pred_region
          %189 = dma.done [#allocation5], 1280
        $region36: #{tpu_custom_call.1} parent=31 // pred_fallthru
          _
        // Predicated region
        $region37: #{tpu_custom_call.1} parent=31 // pred_check
          %p190 = pneg %p61
        $region38: #{tpu_custom_call.1} parent=31 // pred_check_branch
          %192 = sbr.rel (%p190) target = $region40
        $region39: #{tpu_custom_call.1} parent=31 // pred_region
          %193 = dma.done [#allocation8], 5120
        $region40: #{tpu_custom_call.1} parent=31 // pred_fallthru
          _
        %s194 = sand.u32 %s24, 1
        %s195 = scalar_lea.sflag [#allocation5], %s194
        %s196 = sand.u32 %s74, 1
        %s197 = smul.addr %s196, 16
        %s198 = scalar_lea.vmem [#allocation9], %s197
        // Predicated region
        $region41: #{tpu_custom_call.1} parent=31 // pred_check
          %p199 = pneg %p87
        $region42: #{tpu_custom_call.1} parent=31 // pred_check_branch
          %201 = sbr.rel (%p199) target = $region44
        $region43: #{tpu_custom_call.1} parent=31 // pred_region
          %202 = dma.done %s195, 256
        $region44: #{tpu_custom_call.1} parent=31 // pred_fallthru
          _
        %p203 = pneg %p40
        %p204 = pneg %p37
        %p205 = pneg %p61
        %p206 = pneg %p58
        %s207 = sand.u32 %s24, 1
        %s208 = scalar_lea.sflag [#allocation5], %s207
        %s209 = sand.u32 %s74, 1
        %s210 = smul.addr %s209, 16
        %s211 = scalar_lea.vmem [#allocation9], %s210
        %p212 = pneg %p87
        %p213 = pneg %p84
        %p214 = pneg %p113
        %p215 = pneg %p110
        %s216 = sand.u32 %s100, 1
        %s217 = scalar_lea.sflag [#allocation6], %s216
        %s218 = sand.u32 %s100, 1
        %s219 = smul.addr %s218, 16
        %s220 = scalar_lea.vmem [#allocation10], %s219
        %s221 = smul.u32 %s24, 2
        %s222 = sld [smem:[#allocation3 + %s221]]
        %s223 = sadd.s32 %s221, 1
        %s224 = sld [smem:[#allocation3 + %s223]]
        %s225 = smul.u32 %s224, 16
        %s226 = scalar_lea.vmem [#allocation4], %s225
        %v227 = vld [vmem:[%s226] sm:$0xff]
        %v228 = vld [vmem:[%s226 + $0x8] sm:$0xff]
        %s229 = smul.u32 %s222, 64
        %s230 = scalar_lea.vmem [#allocation7], %s229
        %v231 = vld [vmem:[%s230] sm:$0xff]
        %v232 = vld [vmem:[%s230 + $0x8] sm:$0xff]
        %v233 = vld [vmem:[%s230 + $0x10] sm:$0xff]
        %v234 = vld [vmem:[%s230 + $0x18] sm:$0xff]
        %v235 = vld [vmem:[%s230 + $0x20] sm:$0xff]
        %v236 = vld [vmem:[%s230 + $0x28] sm:$0xff]
        %v237 = vld [vmem:[%s230 + $0x30] sm:$0xff]
        %v238 = vld [vmem:[%s230 + $0x38] sm:$0xff]
        %v239 = vld [vmem:[%s198] sm:$0xff]
        %v240 = vld [vmem:[%s198 + $0x8] sm:$0xff]
        %vm241 = vcmask 130048
        %v243 = vsel %vm241, %v227, 0
        %v246 = vsel %vm241, %v228, 0
        %248 = vmatprep.subr.mxu0 0.0
        %249 = vmatpush1.msra.mxu0 0.0
        %250 = vmatprep.subr.mxu0 0.0
        %251 = vmatpush1.msra.mxu0 0.0
        %252 = vmatprep.subr.mxu0 0.0
        %253 = vmatpush1.msra.mxu0 0.0
        %254 = vmatprep.subr.mxu0 0.0
        %255 = vmatpush1.msra.mxu0 0.0
        %256 = vmatprep.subr.mxu0 0.0
        %257 = vmatpush1.msra.mxu0 0.0
        %258 = vmatprep.subr.mxu0 0.0
        %259 = vmatpush1.msra.mxu0 0.0
        %260 = vmatprep.subr.mxu0 0.0
        %261 = vmatpush1.msra.mxu0 0.0
        %262 = vmatprep.subr.mxu0 0.0
        %263 = vmatpush1.msra.mxu0 0.0
        %264 = vmatprep.subr.mxu0 0.0
        %265 = vmatpush1.msra.mxu0 0.0
        %266 = vmatprep.subr.mxu0 0.0
        %267 = vmatpush1.msra.mxu0 0.0
        %268 = vmatprep.subr.mxu0 0.0
        %269 = vmatpush1.msra.mxu0 0.0
        %270 = vmatprep.subr.mxu0 0.0
        %271 = vmatpush1.msra.mxu0 0.0
        %272 = vmatprep.subr.mxu0 0.0
        %273 = vmatpush1.msra.mxu0 0.0
        %274 = vmatprep.subr.mxu0 0.0
        %275 = vmatpush1.msra.mxu0 0.0
        %276 = vmatprep.subr.mxu0 0.0
        %277 = vmatpush1.msra.mxu0 %v240
        %278 = vmatprep.subr.mxu0 0.0
        %279 = vmatpush1.msra.mxu0 %v239
        %280 = vmatprep.subr.mxu0 0.0
        %281 = vmatpush2.msra.mxu0 0.0
        %282 = vmatprep.subr.mxu0 0.0
        %283 = vmatpush2.msra.mxu0 0.0
        %284 = vmatprep.subr.mxu0 0.0
        %285 = vmatpush2.msra.mxu0 0.0
        %286 = vmatprep.subr.mxu0 0.0
        %287 = vmatpush2.msra.mxu0 0.0
        %288 = vmatprep.subr.mxu0 0.0
        %289 = vmatpush2.msra.mxu0 0.0
        %290 = vmatprep.subr.mxu0 0.0
        %291 = vmatpush2.msra.mxu0 0.0
        %292 = vmatprep.subr.mxu0 0.0
        %293 = vmatpush2.msra.mxu0 0.0
        %294 = vmatprep.subr.mxu0 0.0
        %295 = vmatpush2.msra.mxu0 0.0
        %296 = vmatprep.subr.mxu0 0.0
        %297 = vmatpush2.msra.mxu0 0.0
        %298 = vmatprep.subr.mxu0 0.0
        %299 = vmatpush2.msra.mxu0 0.0
        %300 = vmatprep.subr.mxu0 0.0
        %301 = vmatpush2.msra.mxu0 0.0
        %302 = vmatprep.subr.mxu0 0.0
        %303 = vmatpush2.msra.mxu0 0.0
        %304 = vmatprep.subr.mxu0 0.0
        %305 = vmatpush2.msra.mxu0 0.0
        %306 = vmatprep.subr.mxu0 0.0
        %307 = vmatpush2.msra.mxu0 0.0
        %308 = vmatprep.subr.mxu0 0.0
        %309 = vmatpush2.msra.mxu0 0.0
        %310 = vmatprep.subr.mxu0 0.0
        %311 = vmatpush2.msra.mxu0 0.0
        %312 = vmatprep.mubr.f32.mxu0 0.0
        %313 = vmatmul.mubr.f32.gmra.mxu0 %v243
        %v314 = vpop.f32.mrf.mxu0
        %v315 = vadd.f32 0.0, %v314
        %v316 = vpop.f32.mrf.mxu0
        %317 = vmatprep.mubr.f32.mxu0 0.0
        %318 = vmatmul.mubr.f32.gmra.mxu0 %v246
        %v319 = vpop.f32.mrf.mxu0
        %v320 = vadd.f32 0.0, %v319
        %v321 = vpop.f32.mrf.mxu0
        %322 = vdwg.mxu0
        %vm323 = vcmask 523264
        %v325 = vsel %vm323, %v315, 0
        %v328 = vsel %vm323, %v320, 0
        %330 = vmatprep.subr.mxu0 0.0
        %331 = vmatpush1.msra.mxu0 0.0
        %332 = vmatprep.subr.mxu0 0.0
        %333 = vmatpush1.msra.mxu0 0.0
        %334 = vmatprep.subr.mxu0 0.0
        %335 = vmatpush1.msra.mxu0 0.0
        %336 = vmatprep.subr.mxu0 0.0
        %337 = vmatpush1.msra.mxu0 0.0
        %338 = vmatprep.subr.mxu0 0.0
        %339 = vmatpush1.msra.mxu0 0.0
        %340 = vmatprep.subr.mxu0 0.0
        %341 = vmatpush1.msra.mxu0 0.0
        %342 = vmatprep.subr.mxu0 0.0
        %343 = vmatpush1.msra.mxu0 0.0
        %344 = vmatprep.subr.mxu0 0.0
        %345 = vmatpush1.msra.mxu0 0.0
        %346 = vmatprep.subr.mxu0 0.0
        %347 = vmatpush1.msra.mxu0 %v238
        %348 = vmatprep.subr.mxu0 0.0
        %349 = vmatpush1.msra.mxu0 %v237
        %350 = vmatprep.subr.mxu0 0.0
        %351 = vmatpush1.msra.mxu0 %v236
        %352 = vmatprep.subr.mxu0 0.0
        %353 = vmatpush1.msra.mxu0 %v235
        %354 = vmatprep.subr.mxu0 0.0
        %355 = vmatpush1.msra.mxu0 %v234
        %356 = vmatprep.subr.mxu0 0.0
        %357 = vmatpush1.msra.mxu0 %v233
        %358 = vmatprep.subr.mxu0 0.0
        %359 = vmatpush1.msra.mxu0 %v232
        %360 = vmatprep.subr.mxu0 0.0
        %361 = vmatpush1.msra.mxu0 %v231
        %362 = vmatprep.subr.mxu0 0.0
        %363 = vmatpush2.msra.mxu0 0.0
        %364 = vmatprep.subr.mxu0 0.0
        %365 = vmatpush2.msra.mxu0 0.0
        %366 = vmatprep.subr.mxu0 0.0
        %367 = vmatpush2.msra.mxu0 0.0
        %368 = vmatprep.subr.mxu0 0.0
        %369 = vmatpush2.msra.mxu0 0.0
        %370 = vmatprep.subr.mxu0 0.0
        %371 = vmatpush2.msra.mxu0 0.0
        %372 = vmatprep.subr.mxu0 0.0
        %373 = vmatpush2.msra.mxu0 0.0
        %374 = vmatprep.subr.mxu0 0.0
        %375 = vmatpush2.msra.mxu0 0.0
        %376 = vmatprep.subr.mxu0 0.0
        %377 = vmatpush2.msra.mxu0 0.0
        %378 = vmatprep.subr.mxu0 0.0
        %379 = vmatpush2.msra.mxu0 0.0
        %380 = vmatprep.subr.mxu0 0.0
        %381 = vmatpush2.msra.mxu0 0.0
        %382 = vmatprep.subr.mxu0 0.0
        %383 = vmatpush2.msra.mxu0 0.0
        %384 = vmatprep.subr.mxu0 0.0
        %385 = vmatpush2.msra.mxu0 0.0
        %386 = vmatprep.subr.mxu0 0.0
        %387 = vmatpush2.msra.mxu0 0.0
        %388 = vmatprep.subr.mxu0 0.0
        %389 = vmatpush2.msra.mxu0 0.0
        %390 = vmatprep.subr.mxu0 0.0
        %391 = vmatpush2.msra.mxu0 0.0
        %392 = vmatprep.subr.mxu0 0.0
        %393 = vmatpush2.msra.mxu0 0.0
        %394 = vmatprep.mubr.f32.mxu0 0.0
        %395 = vmatmul.mubr.f32.gmra.mxu0 %v325
        %v396 = vpop.f32.mrf.mxu0
        %v397 = vadd.f32 0.0, %v396
        %v398 = vpop.f32.mrf.mxu0
        %399 = vmatprep.mubr.f32.mxu0 0.0
        %400 = vmatmul.mubr.f32.gmra.mxu0 %v328
        %v401 = vpop.f32.mrf.mxu0
        %v402 = vadd.f32 0.0, %v401
        %v403 = vpop.f32.mrf.mxu0
        %404 = vdwg.mxu0
        %405 = vst.msk [vmem:[%s220] sm:$0xff] %vm323, %v397
        %406 = vst.msk [vmem:[%s220 + $0x8] sm:$0xff] %vm323, %v402
        %s407 = sand.u32 %s100, 1
        %s408 = scalar_lea.sflag [#allocation6], %s407
        %s409 = sand.u32 %s100, 1
        %s410 = smul.addr %s409, 16
        %s411 = scalar_lea.vmem [#allocation10], %s410
        // Predicated region
        $region45: #{tpu_custom_call.1} parent=31 // pred_check
          %p412 = pneg %p110
        $region46: #{tpu_custom_call.1} parent=31 // pred_check_branch
          %414 = sbr.rel (%p412) target = $region48
        $region47: #{tpu_custom_call.1} parent=31 // pred_region
          %s416 = ssub.s32 256, 256
          %417 = vsyncadd %s408, %s416
          %s418 = smul.addr %s24, 2
          %s419 = smul.addr %s418, 128
          %s420 = scalar_lea.hbm %s4, %s419
          %s421 = sshll.u32 %s411, 4
          %s422 = int_to_ptr.vmem [resolvable:$true] %s421
          %427 = dma.vmem_to_hbm [thread:$0]  %s422, 256, %s420, %s408, 128, 128, 8
        $region48: #{tpu_custom_call.1} parent=31 // pred_fallthru
          _
      $region32: #{tpu_custom_call.1} parent=5 // pred_fallthru
        _
      %p428 = scmp.le.s32.totalorder 2, %s19
      // Predicated region
      $region49: #{tpu_custom_call.1} parent=5 // pred_check
        %p429 = pneg %p428
      $region50: #{tpu_custom_call.1} parent=5 // pred_check_branch
        %431 = sbr.rel (%p429) target = $region52
      $region51: #{tpu_custom_call.1} parent=5 // pred_region
        %s432 = ssub.s32 %s19, 2
        // Predicated region
        $region53: #{tpu_custom_call.1} parent=51 // pred_check
          %p433 = pneg %p116
        $region54: #{tpu_custom_call.1} parent=51 // pred_check_branch
          %435 = sbr.rel (%p433) target = $region56
        $region55: #{tpu_custom_call.1} parent=51 // pred_region
          %s436 = sand.u32 %s101, 1
          %s437 = scalar_lea.sflag [#allocation6], %s436
          %s438 = sand.u32 %s101, 1
          %s439 = smul.addr %s438, 16
          %s440 = scalar_lea.vmem [#allocation10], %s439
          %441 = dma.done %s437, 256
        $region56: #{tpu_custom_call.1} parent=51 // pred_fallthru
          _
      $region52: #{tpu_custom_call.1} parent=5 // pred_fallthru
        _
    $region6: #{tpu_custom_call.1} parent=1 // loop_footer
      %s23 = sadd.s32 1, %s19
    $region7: #{tpu_custom_call.1} parent=1 // loop_footer_branch
      %18 = sbr.rel target = $region3
    $region8: #{tpu_custom_call.1} parent=1 // loop_exit
      _
    %442 = vsyncpa [#allocation5], 1
    %s443 = scalar_lea.sflag [#allocation5], 1
    %444 = vsyncpa %s443, 1
    %445 = vsyncpa [#allocation8], 1
    %446 = vsyncpa [#allocation6], 1
    %s447 = scalar_lea.sflag [#allocation6], 1
    %448 = vsyncpa %s447, 1

</llo_original>
